<compile_context>
chip_gen: v7x
topology: tpu7x:2x2x1
jax: 0.10.0
libtpu: 0.0.40
codegen_flags: <defaults>
</compile_context>

<pallas_src>
import jax
import jax.numpy as jnp
from jax.experimental import pallas as pl
from jax.experimental.pallas import tpu as pltpu


# ----------------------------- helpers --------------------------------------

def _round_up(x, m):
    return ((x + m - 1) // m) * m


def _divisors_desc(n):
    return sorted((d for d in range(1, n + 1) if n % d == 0), reverse=True)


def _vmem_capacity_bytes():
    """Per-core VMEM capacity (generation-aware), with a conservative default."""
    try:
        info = pltpu.get_tpu_info()
        cap = getattr(info, "vmem_capacity_bytes", None)
        if cap:
            return int(cap)
    except Exception:
        pass
    return 64 * 1024 * 1024  # conservative: v7x per-core VMEM


def _choose_tile(n, align, cap):
    """Tile size + padded extent for one dim.

    Full dim if it fits (no padding, legal even if not `align`-aligned);
    otherwise the multiple-of-`align` tile <= cap that minimizes padding
    (ties broken toward the larger tile)."""
    if n <= cap:
        return n, n
    best_t, best_pad = align, _round_up(n, align)
    t = align
    while t <= cap:
        padded = _round_up(n, t)
        if padded < best_pad or (padded == best_pad and t > best_t):
            best_t, best_pad = t, padded
        t += align
    return best_t, best_pad


# ----------------------------- kernel ---------------------------------------

def _distmult_kernel(w_ref, user_ref, loc_ref, out_ref):
    # w_ref:    (1, D)          DistMult relation diagonal.
    # user_ref: (Bblk, TM, D)   user-embedding tile.
    # loc_ref:  (Bblk, TN, D)   location-embedding tile.
    # out_ref:  (Bblk, TM, TN)  sigmoid(scores) tile.
    w = w_ref[...]                                   # (1, D)

    # Diag scale in f32 (one broadcast per grid step, no inner loop).
    u_w = user_ref[...] * w                          # (Bblk, TM, D)

    # NT contraction on the shared last dim -> MXU directly, no transpose.
    logits = jnp.einsum(
        "bud,bld->bul", u_w, loc_ref[...],
        preferred_element_type=jnp.float32)          # (Bblk, TM, TN) f32

    # sigmoid(x) = 1 / (1 + exp(-x)): exp + approx reciprocal both hit the
    # EUP slot, keeping the VALU/store path free.  Clip keeps exp finite.
    x = jnp.clip(logits, -30.0, 30.0)
    sig = pl.reciprocal(1.0 + jnp.exp(-x), approx=True)
    out_ref[...] = sig.astype(out_ref.dtype)


# ----------------------------- wrapper --------------------------------------

def distmult_forward(final_user_loc_embedding, weight, n_user, n_loc,
                     out_dtype=None):
    """out[b] = sigmoid((x[b,:n_user] @ diag(w)) @ x[b, n_user:n_user+n_loc]^T).

    final_user_loc_embedding: [B, N, D] with N >= n_user + n_loc.
    Returns [B, n_user, n_loc].
    """
    x = final_user_loc_embedding
    B, _, D = x.shape
    out_dtype = x.dtype if out_dtype is None else out_dtype

    # Slicing the two slabs is glue; done in plain JAX (views of x).
    user_h = x[:, :n_user, :]
    loc_h = x[:, n_user:n_user + n_loc, :]

    in_b = jnp.dtype(x.dtype).itemsize
    out_b = jnp.dtype(out_dtype).itemsize

    # ---- generation-aware VMEM budget --------------------------------------
    vmem_cap = _vmem_capacity_bytes()
    budget = int(vmem_cap * 0.55)       # per-step working set (incl. dbl buffers)
    vmem_limit = int(vmem_cap * 0.75)   # 96 MiB on 128-MiB parts, 48 MiB on v7x

    def step_bytes(bblk, tm, tn):
        # Double-buffered input/output blocks + the f32 logits intermediate.
        io = 2 * bblk * (tm + tn) * D * in_b
        io += 2 * bblk * tm * tn * out_b
        inter = bblk * tm * tn * 4
        return io + inter + 2 * D * in_b

    # ---- tile selection ------------------------------------------------------
    if step_bytes(1, n_user, n_loc) <= budget:
        # Fast path: exact full-dim blocks -> no input pad, no output slice.
        TM, TN = n_user, n_loc
        M_pad, N_pad = n_user, n_loc
        user_p, loc_p = user_h, loc_h
        need_slice = False
    else:
        big_vmem = vmem_cap >= 96 * 1024 * 1024
        tm_cap = 512 if big_vmem else 256
        tn_cap = 1024 if big_vmem else 512
        TM, M_pad = _choose_tile(n_user, 8, tm_cap)
        TN, N_pad = _choose_tile(n_loc, 128, tn_cap)
        # Shrink tiles if even Bblk=1 exceeds the budget.
        while step_bytes(1, TM, TN) > budget and (TN > 128 or TM > 8):
            if TN >= TM and TN > 128:
                TN = _round_up(TN // 2, 128)
            else:
                TM = _round_up(max(TM // 2, 8), 8)
            M_pad = _round_up(n_user, TM)
            N_pad = _round_up(n_loc, TN)
        # TODO(synk): tile D with an f32 VMEM accumulator if even (8,128)
        # output tiles exceed the budget for extremely large embed_dim.
        user_p = (jnp.pad(user_h, ((0, 0), (0, M_pad - n_user), (0, 0)))
                  if M_pad != n_user else user_h)
        loc_p = (jnp.pad(loc_h, ((0, 0), (0, N_pad - n_loc), (0, 0)))
                 if N_pad != n_loc else loc_h)
        need_slice = (M_pad != n_user) or (N_pad != n_loc)

    ni = M_pad // TM
    nj = N_pad // TN

    # ---- batch-block selection ----------------------------------------------
    # Largest divisor of B that fits the VMEM budget; keep >=2 total grid
    # steps whenever possible so v7x can shard across its 2 TensorCores.
    Bblk = 1
    for cand in _divisors_desc(B):
        if cand > 256:
            continue
        if step_bytes(cand, TM, TN) > budget:
            continue
        if ni * nj == 1 and B >= 2 and (B // cand) < 2:
            continue
        Bblk = cand
        break
    nb = B // Bblk

    # ---- grid ordering: inner axis re-streams the *smaller* slab -------------
    if n_user <= n_loc:
        grid = (nb, nj, ni)
        w_map = lambda b, j, i: (0, 0)
        user_map = lambda b, j, i: (b, i, 0)
        loc_map = lambda b, j, i: (b, j, 0)
        out_map = lambda b, j, i: (b, i, j)
    else:
        grid = (nb, ni, nj)
        w_map = lambda b, i, j: (0, 0)
        user_map = lambda b, i, j: (b, i, 0)
        loc_map = lambda b, i, j: (b, j, 0)
        out_map = lambda b, i, j: (b, i, j)

    w2d = weight.reshape(1, D).astype(x.dtype)

    out_padded = pl.pallas_call(
        _distmult_kernel,
        out_shape=jax.ShapeDtypeStruct((B, M_pad, N_pad), out_dtype),
        grid_spec=pltpu.PrefetchScalarGridSpec(
            num_scalar_prefetch=0,
            grid=grid,
            in_specs=[
                pl.BlockSpec((1, D), w_map),             # weight (resident)
                pl.BlockSpec((Bblk, TM, D), user_map),   # user_h tile
                pl.BlockSpec((Bblk, TN, D), loc_map),    # loc_h tile
            ],
            out_specs=pl.BlockSpec((Bblk, TM, TN), out_map),
        ),
        compiler_params=pltpu.CompilerParams(
            # No reduction axis (D untiled) -> every grid axis is parallel,
            # letting v7x shard steps across its 2 TensorCores.
            dimension_semantics=("parallel", "parallel", "parallel"),
            vmem_limit_bytes=vmem_limit,
        ),
    )(w2d, user_p, loc_p)

    if need_slice:
        out_padded = out_padded[:, :n_user, :n_loc]
    return out_padded


# ----------------------------- demo / check ---------------------------------

if __name__ == "__main__":
    # Small shapes consistent with the module's forward.
    embed_dim = 32
    batch = 2
    n_user = 16
    n_loc = 24
    n_nodes = n_user + n_loc

    key = jax.random.PRNGKey(0)
    k_w, k_x = jax.random.split(key)

    # nn.Parameter(torch.rand(embed_dim)) -> uniform [0, 1)
    weight = jax.random.uniform(k_w, (embed_dim,), dtype=jnp.float32)
    x = jax.random.normal(k_x, (batch, n_nodes, embed_dim), dtype=jnp.float32)

    out = distmult_forward(x, weight, n_user, n_loc)
    out = jax.block_until_ready(out)
    assert out.shape == (batch, n_user, n_loc)

    # Pure-JAX f32 reference (module semantics).
    user_h = x[:, :n_user, :]
    loc_h = x[:, n_user:n_user + n_loc, :]
    ref_f32 = jax.nn.sigmoid(
        jnp.einsum("bud,bld->bul", user_h * weight[None, None, :], loc_h))

    assert jnp.allclose(out, ref_f32, atol=2e-2, rtol=2e-2), "mismatch vs f32 ref"

    print("KERNEL_OK")
</pallas_src>

<mosaic_0001>
module attributes {stable_mosaic.version = 11 : i64} {
  func.func @_distmult_kernel(%arg0: i32, %arg1: i32, %arg2: i32, %arg3: memref<1x32xf32, #tpu.memory_space<vmem>>, %arg4: memref<1x16x32xf32, #tpu.memory_space<vmem>>, %arg5: memref<1x24x32xf32, #tpu.memory_space<vmem>>, %arg6: memref<1x16x24xf32, #tpu.memory_space<vmem>>) attributes {dimension_semantics = [#tpu.dimension_semantics<parallel>, #tpu.dimension_semantics<parallel>, #tpu.dimension_semantics<parallel>], iteration_bounds = array<i64: 2, 1, 1>, scalar_prefetch = 0 : i64, scratch_operands = 0 : i64, tpu.core_type = #tpu.core_type<tc>, window_params = [{pipeline_mode = #tpu.pipeline_mode<synchronous>, transform_indices = @transform_0, window_bounds = array<i64: 1, 32>}, {transform_indices = @transform_1, window_bounds = array<i64: 1, 16, 32>}, {transform_indices = @transform_2, window_bounds = array<i64: 1, 24, 32>}, {transform_indices = @transform_3, window_bounds = array<i64: 1, 16, 24>}]} {
    %c0 = arith.constant 0 : index
    %c0_0 = arith.constant 0 : index
    %0 = vector.load %arg3[%c0, %c0_0] : memref<1x32xf32, #tpu.memory_space<vmem>>, vector<1x32xf32>
    %c0_1 = arith.constant 0 : index
    %c0_2 = arith.constant 0 : index
    %c0_3 = arith.constant 0 : index
    %1 = vector.load %arg4[%c0_1, %c0_2, %c0_3] : memref<1x16x32xf32, #tpu.memory_space<vmem>>, vector<1x16x32xf32>
    %2 = vector.shape_cast %0 : vector<1x32xf32> to vector<1x1x32xf32>
    %3 = vector.broadcast %2 : vector<1x1x32xf32> to vector<1x16x32xf32>
    %4 = arith.mulf %1, %3 : vector<1x16x32xf32>
    %c0_4 = arith.constant 0 : index
    %c0_5 = arith.constant 0 : index
    %c0_6 = arith.constant 0 : index
    %5 = vector.load %arg5[%c0_4, %c0_5, %c0_6] : memref<1x24x32xf32, #tpu.memory_space<vmem>>, vector<1x24x32xf32>
    "tpu.trace_start"() <{level = 10 : i32, message = "bud,bld->bul"}> : () -> ()
    %cst = arith.constant dense<0.000000e+00> : vector<1x16x24xf32>
    %6 = tpu.matmul %4, %5, %cst {dimension_numbers = #tpu.dot_dimension_numbers<[2], [2], [1], [1], [0, 0, 0, 1, 1, 1], [0], [0]>} : vector<1x16x32xf32>, vector<1x24x32xf32>, vector<1x16x24xf32> -> vector<1x16x24xf32>
    %cst_7 = arith.constant -3.000000e+01 : f32
    %cst_8 = arith.constant 3.000000e+01 : f32
    "tpu.trace_stop"() : () -> ()
    %7 = vector.broadcast %cst_7 : f32 to vector<1x16x24xf32>
    %8 = arith.maximumf %7, %6 : vector<1x16x24xf32>
    %9 = vector.broadcast %cst_8 : f32 to vector<1x16x24xf32>
    %10 = arith.minimumf %9, %8 : vector<1x16x24xf32>
    %cst_9 = arith.constant 0.000000e+00 : f32
    %11 = vector.broadcast %cst_9 : f32 to vector<1x16x24xf32>
    %12 = arith.subf %11, %10 : vector<1x16x24xf32>
    %13 = math.exp %12 : vector<1x16x24xf32>
    %cst_10 = arith.constant 1.000000e+00 : f32
    %14 = vector.broadcast %cst_10 : f32 to vector<1x16x24xf32>
    %15 = arith.addf %14, %13 : vector<1x16x24xf32>
    %16 = tpu.reciprocal %15 {approx = true} : vector<1x16x24xf32> -> vector<1x16x24xf32>
    %c0_11 = arith.constant 0 : index
    %c0_12 = arith.constant 0 : index
    %c0_13 = arith.constant 0 : index
    %17 = vector.load %arg6[%c0_11, %c0_12, %c0_13] : memref<1x16x24xf32, #tpu.memory_space<vmem>>, vector<1x16x24xf32>
    tpu.vector_store %arg6[%c0_11, %c0_12, %c0_13], %16 {strides = array<i32>} : memref<1x16x24xf32, #tpu.memory_space<vmem>>, vector<1x16x24xf32>,
    return
  }
  func.func @transform_0(%arg0: i32, %arg1: i32, %arg2: i32) -> (i32, i32) {
    %c0_i32 = arith.constant 0 : i32
    %c0_i32_0 = arith.constant 0 : i32
    %c0_i32_1 = arith.constant 0 : i32
    return %c0_i32, %c0_i32_0 : i32, i32
  }
  func.func @transform_1(%arg0: i32, %arg1: i32, %arg2: i32) -> (i32, i32, i32) {
    %c0_i32 = arith.constant 0 : i32
    %c0_i32_0 = arith.constant 0 : i32
    return %arg0, %arg2, %c0_i32 : i32, i32, i32
  }
  func.func @transform_2(%arg0: i32, %arg1: i32, %arg2: i32) -> (i32, i32, i32) {
    %c0_i32 = arith.constant 0 : i32
    %c0_i32_0 = arith.constant 0 : i32
    return %arg0, %arg1, %c0_i32 : i32, i32, i32
  }
  func.func @transform_3(%arg0: i32, %arg1: i32, %arg2: i32) -> (i32, i32, i32) {
    %c0_i32 = arith.constant 0 : i32
    return %arg0, %arg2, %arg1 : i32, i32, i32
  }
}

</mosaic_0001>

<llo_original>
// kernel: tpu_custom_call.1
$region0: #{tpu_custom_call.1}
  #allocation0 [shape = 'u32[]', space=smem, size = 0x4, offset = 0x4, fixed_abs, tag = 'smem constant byte address 0x4 - core index']
  #allocation1 [shape = 'u32[144,128]{1,0:T(1,128)}', space=vmem, size = 0x12000, scoped, tag = 'internal scratch']
  %s0 = inlined_call_operand.hbm [shape: f32[1,32], index: 0, kind: input, shape index: {}]
  %s1 = inlined_call_operand.hbm [shape: f32[2,16,32], index: 1, kind: input, shape index: {}]
  %s2 = inlined_call_operand.hbm [shape: f32[2,24,32], index: 2, kind: input, shape index: {}]
  %s3 = inlined_call_operand.hbm [shape: f32[2,16,24], index: 3, kind: output, shape index: {}]
  %s4 = sld [smem:[#allocation0]]
  $region57: #{tpu_custom_call.1} parent=0
    _
  %s6 = ssub.s32 1, %s4
  %s7 = scalar_select 0, %s6, %s4
  $region1: #{tpu_custom_call.1} parent=0
    #allocation2 [shape = 'u8[512]{0}', space=vmem, size = 0x400, scoped, tag = 'input window, operand 0, single buffered']
    #allocation3 [shape = 's32[2]{0}', space=sflag, size = 0x8, scoped, tag = 'scoped memory for tpu_custom_call.1']
    #allocation4 [shape = 's32[2]{0}', space=sflag, size = 0x8, scoped, tag = 'scoped memory for tpu_custom_call.1']
    #allocation5 [shape = 'u8[16384]{0}', space=vmem, size = 0x4000, scoped, tag = 'input window, operand 1']
    #allocation6 [shape = 's32[2]{0}', space=sflag, size = 0x8, scoped, tag = 'scoped memory for tpu_custom_call.1']
    #allocation7 [shape = 'u8[24576]{0}', space=vmem, size = 0x6000, scoped, tag = 'input window, operand 2']
    #allocation8 [shape = 'u8[16384]{0}', space=vmem, size = 0x4000, scoped, tag = 'output window, operand 0']
    %8 = vsyncpa [#allocation3], 0
    %9 = vsyncpa [#allocation6], 0
    %s10 = scalar_lea.sflag [#allocation6], 1
    %11 = vsyncpa %s10, 0
    %12 = vsyncpa [#allocation4], 0
    %s13 = scalar_lea.sflag [#allocation4], 1
    %14 = vsyncpa %s13, 0
    loop: start=0, step=1, limit=4
    $region2: #{tpu_custom_call.1} parent=1 // loop_pre_header
      _
    $region3: #{tpu_custom_call.1} parent=1 // loop_header
      %s16 = sphi 0, %s20
      %p17 = scmp.ge.s32.totalorder %s16, 4
      %s23 = sphi 0, %s42
      %s24 = sphi 0, %s38
      %s25 = sphi 0, %s34
      %s26 = sphi 0, %s23
      %s27 = sphi 0, %s24
      %s28 = sphi 0, %s25
      %s29 = sphi 0, %s26
      %s30 = sphi 0, %s27
      %s31 = sphi 0, %s28
      %s43 = sphi 0, %s43
      %s45 = sphi 0, %s43
      %s46 = sphi 0, %s45
      %s60 = sphi 0, %s46
      %s68 = sphi 0, %s70
      %s71 = sphi 0, %s68
      %s72 = sphi 0, %s71
      %s88 = sphi 0, %s72
      %s96 = sphi 0, %s98
      %s99 = sphi 0, %s96
      %s100 = sphi 0, %s99
      %s116 = sphi 0, %s100
      %s126 = sphi 0, %s128
      %s129 = sphi 0, %s126
      %s130 = sphi 0, %s129
      %s146 = sphi 0, %s130
    $region4: #{tpu_custom_call.1} parent=1 // loop_header_branch
      %19 = sbr.rel (%p17) target = $region8
    $region5: #{tpu_custom_call.1} parent=1 // loop_body
      %s21 = ssub.s32 %s16, 1
      %s22 = ssub.s32 %s16, 2
      %s32 = sadd.s32 1, %s25
      %p33 = scmp.ge.s32.totalorder %s32, 1
      %s34 = scalar_select %p33, 0, %s32
      %s35 = sadd.s32 1, %s24
      %s36 = scalar_select %p33, %s35, %s24
      %p37 = scmp.ge.s32.totalorder %s36, 1
      %s38 = scalar_select %p37, 0, %s36
      %s39 = sadd.s32 1, %s23
      %s40 = scalar_select %p37, %s39, %s23
      %p41 = scmp.ge.s32.totalorder %s40, 2
      %s42 = scalar_select %p41, 0, %s40
      %s44 = sadd.s32 %s43, 1
      %p47 = scmp.eq.s32.totalorder %s16, 1
      %p48 = scmp.ne.s32.totalorder %s43, %s45
      %p49 = scmp.eq.s32.totalorder %s16, 0
      %p50 = por %p48, %p49
      %p51 = scmp.ne.s32.totalorder %s43, %s45
      %p52 = scmp.eq.s32.totalorder %s21, 1
      %p53 = por %p51, %p52
      %p54 = scmp.ne.s32.totalorder %s45, %s46
      %p55 = scmp.eq.s32.totalorder %s21, 0
      %p56 = por %p54, %p55
      %p57 = scmp.ne.s32.totalorder %s45, %s46
      %p58 = scmp.eq.s32.totalorder %s22, 1
      %p59 = por %p57, %p58
      %p61 = scmp.ne.s32.totalorder %s46, %s60
      %p62 = scmp.eq.s32.totalorder %s22, 0
      %p63 = por %p61, %p62
      %s64 = ssub.s32 %s23, %s42
      %s65 = ssub.s32 %s25, %s34
      %s66 = sor.u32 %s64, %s65
      %p67 = scmp.eq.s32.totalorder %s66, 0
      %s69 = sadd.s32 %s68, 1
      %s70 = scalar_select %p67, %s68, %s69
      %p73 = pneg %p67
      %p74 = scmp.eq.s32.totalorder %s16, 1
      %p75 = por %p73, %p74
      %p76 = scmp.ne.s32.totalorder %s68, %s71
      %p77 = scmp.eq.s32.totalorder %s16, 0
      %p78 = por %p76, %p77
      %p79 = scmp.ne.s32.totalorder %s68, %s71
      %p80 = scmp.eq.s32.totalorder %s21, 1
      %p81 = por %p79, %p80
      %p82 = scmp.ne.s32.totalorder %s71, %s72
      %p83 = scmp.eq.s32.totalorder %s21, 0
      %p84 = por %p82, %p83
      %p85 = scmp.ne.s32.totalorder %s71, %s72
      %p86 = scmp.eq.s32.totalorder %s22, 1
      %p87 = por %p85, %p86
      %p89 = scmp.ne.s32.totalorder %s72, %s88
      %p90 = scmp.eq.s32.totalorder %s22, 0
      %p91 = por %p89, %p90
      %s92 = ssub.s32 %s23, %s42
      %s93 = ssub.s32 %s24, %s38
      %s94 = sor.u32 %s92, %s93
      %p95 = scmp.eq.s32.totalorder %s94, 0
      %s97 = sadd.s32 %s96, 1
      %s98 = scalar_select %p95, %s96, %s97
      %p101 = pneg %p95
      %p102 = scmp.eq.s32.totalorder %s16, 1
      %p103 = por %p101, %p102
      %p104 = scmp.ne.s32.totalorder %s96, %s99
      %p105 = scmp.eq.s32.totalorder %s16, 0
      %p106 = por %p104, %p105
      %p107 = scmp.ne.s32.totalorder %s96, %s99
      %p108 = scmp.eq.s32.totalorder %s21, 1
      %p109 = por %p107, %p108
      %p110 = scmp.ne.s32.totalorder %s99, %s100
      %p111 = scmp.eq.s32.totalorder %s21, 0
      %p112 = por %p110, %p111
      %p113 = scmp.ne.s32.totalorder %s99, %s100
      %p114 = scmp.eq.s32.totalorder %s22, 1
      %p115 = por %p113, %p114
      %p117 = scmp.ne.s32.totalorder %s100, %s116
      %p118 = scmp.eq.s32.totalorder %s22, 0
      %p119 = por %p117, %p118
      %s120 = ssub.s32 %s23, %s42
      %s121 = ssub.s32 %s25, %s34
      %s122 = sor.u32 %s120, %s121
      %s123 = ssub.s32 %s24, %s38
      %s124 = sor.u32 %s122, %s123
      %p125 = scmp.eq.s32.totalorder %s124, 0
      %s127 = sadd.s32 %s126, 1
      %s128 = scalar_select %p125, %s126, %s127
      %p131 = pneg %p125
      %p132 = scmp.eq.s32.totalorder %s16, 1
      %p133 = por %p131, %p132
      %p134 = scmp.ne.s32.totalorder %s126, %s129
      %p135 = scmp.eq.s32.totalorder %s16, 0
      %p136 = por %p134, %p135
      %p137 = scmp.ne.s32.totalorder %s126, %s129
      %p138 = scmp.eq.s32.totalorder %s21, 1
      %p139 = por %p137, %p138
      %p140 = scmp.ne.s32.totalorder %s129, %s130
      %p141 = scmp.eq.s32.totalorder %s21, 0
      %p142 = por %p140, %p141
      %p143 = scmp.ne.s32.totalorder %s129, %s130
      %p144 = scmp.eq.s32.totalorder %s22, 1
      %p145 = por %p143, %p144
      %p147 = scmp.ne.s32.totalorder %s130, %s146
      %p148 = scmp.eq.s32.totalorder %s22, 0
      %p149 = por %p147, %p148
      %p150 = scmp.le.s32.totalorder 1, %s16
      %p151 = scmp.lt.s32.totalorder %s16, 3
      %p152 = pnand %p150, %p151
      %p153 = pneg %p152
      // Predicated region
      $region9: #{tpu_custom_call.1} parent=5 // pred_check
        _
      $region10: #{tpu_custom_call.1} parent=5 // pred_check_branch
        %155 = sbr.rel (%p152) target = $region12
      $region11: #{tpu_custom_call.1} parent=5 // pred_region
        %s156 = ssub.s32 %s16, 1
        // Predicated region
        $region13: #{tpu_custom_call.1} parent=11 // pred_check
          %p157 = pneg %p56
        $region14: #{tpu_custom_call.1} parent=11 // pred_check_branch
          %159 = sbr.rel (%p157) target = $region16
        $region15: #{tpu_custom_call.1} parent=11 // pred_region
          %s161 = ssub.s32 16, 16
          %162 = vsyncadd [#allocation3], %s161
          %s164 = sshll.u32 [#allocation2], 4
          %s165 = int_to_ptr.vmem [resolvable:$true] %s164
          %167 = dma.hbm_to_vmem [thread:$0]  %s0, 16, %s165, [#allocation3]
        $region16: #{tpu_custom_call.1} parent=11 // pred_fallthru
          _
      $region12: #{tpu_custom_call.1} parent=5 // pred_fallthru
        _
      %p168 = scmp.lt.s32.totalorder %s16, 2
      // Predicated region
      $region17: #{tpu_custom_call.1} parent=5 // pred_check
        %p169 = pneg %p168
      $region18: #{tpu_custom_call.1} parent=5 // pred_check_branch
        %171 = sbr.rel (%p169) target = $region20
      $region19: #{tpu_custom_call.1} parent=5 // pred_region
        // Predicated region
        $region21: #{tpu_custom_call.1} parent=19 // pred_check
          %p172 = pneg %p78
        $region22: #{tpu_custom_call.1} parent=19 // pred_check_branch
          %174 = sbr.rel (%p172) target = $region24
        $region23: #{tpu_custom_call.1} parent=19 // pred_region
          %s175 = sand.u32 %s16, 1
          %s176 = scalar_lea.sflag [#allocation6], %s175
          %s177 = sand.u32 %s68, 1
          %s178 = smul.addr %s177, 16
          %s179 = scalar_lea.vmem [#allocation5], %s178
          %s180 = smul.u32 2, %s25
          %s182 = ssub.s32 256, 256
          %183 = vsyncadd %s176, %s182
          %s184 = smul.addr %s23, 2
          %s185 = sadd.s32 %s180, %s184
          %s186 = smul.addr %s185, 128
          %s187 = scalar_lea.hbm %s1, %s186
          %s188 = sshll.u32 %s179, 4
          %s189 = int_to_ptr.vmem [resolvable:$true] %s188
          %194 = dma.hbm_to_vmem [thread:$0]  %s187, 256, %s189, %s176, 128, 128, 8
        $region24: #{tpu_custom_call.1} parent=19 // pred_fallthru
          _
        // Predicated region
        $region25: #{tpu_custom_call.1} parent=19 // pred_check
          %p195 = pneg %p106
        $region26: #{tpu_custom_call.1} parent=19 // pred_check_branch
          %197 = sbr.rel (%p195) target = $region28
        $region27: #{tpu_custom_call.1} parent=19 // pred_region
          %s198 = sand.u32 %s16, 1
          %s199 = scalar_lea.sflag [#allocation6], %s198
          %s200 = sand.u32 %s96, 1
          %s201 = smul.addr %s200, 24
          %s202 = scalar_lea.vmem [#allocation7], %s201
          %s203 = smul.u32 3, %s24
          %s205 = ssub.s32 384, 384
          %206 = vsyncadd %s199, %s205
          %s207 = smul.addr %s23, 3
          %s208 = sadd.s32 %s203, %s207
          %s209 = smul.addr %s208, 128
          %s210 = scalar_lea.hbm %s2, %s209
          %s211 = sshll.u32 %s202, 4
          %s212 = int_to_ptr.vmem [resolvable:$true] %s211
          %217 = dma.hbm_to_vmem [thread:$0]  %s210, 384, %s212, %s199, 128, 128, 8
        $region28: #{tpu_custom_call.1} parent=19 // pred_fallthru
          _
      $region20: #{tpu_custom_call.1} parent=5 // pred_fallthru
        _
      %p218 = scmp.le.s32.totalorder 1, %s16
      %p219 = scmp.lt.s32.totalorder %s16, 3
      %p220 = pnand %p218, %p219
      %p221 = pneg %p220
      // Predicated region
      $region29: #{tpu_custom_call.1} parent=5 // pred_check
        _
      $region30: #{tpu_custom_call.1} parent=5 // pred_check_branch
        %223 = sbr.rel (%p220) target = $region32
      $region31: #{tpu_custom_call.1} parent=5 // pred_region
        %s224 = ssub.s32 %s16, 1
        // Predicated region
        $region33: #{tpu_custom_call.1} parent=31 // pred_check
          %p225 = pneg %p56
        $region34: #{tpu_custom_call.1} parent=31 // pred_check_branch
          %227 = sbr.rel (%p225) target = $region36
        $region35: #{tpu_custom_call.1} parent=31 // pred_region
          %228 = dma.done [#allocation3], 16
        $region36: #{tpu_custom_call.1} parent=31 // pred_fallthru
          _
        %s229 = sand.u32 %s21, 1
        %s230 = scalar_lea.sflag [#allocation6], %s229
        %s231 = sand.u32 %s71, 1
        %s232 = smul.addr %s231, 16
        %s233 = scalar_lea.vmem [#allocation5], %s232
        // Predicated region
        $region37: #{tpu_custom_call.1} parent=31 // pred_check
          %p234 = pneg %p84
        $region38: #{tpu_custom_call.1} parent=31 // pred_check_branch
          %236 = sbr.rel (%p234) target = $region40
        $region39: #{tpu_custom_call.1} parent=31 // pred_region
          %237 = dma.done %s230, 256
        $region40: #{tpu_custom_call.1} parent=31 // pred_fallthru
          _
        %s238 = sand.u32 %s21, 1
        %s239 = scalar_lea.sflag [#allocation6], %s238
        %s240 = sand.u32 %s99, 1
        %s241 = smul.addr %s240, 24
        %s242 = scalar_lea.vmem [#allocation7], %s241
        // Predicated region
        $region41: #{tpu_custom_call.1} parent=31 // pred_check
          %p243 = pneg %p112
        $region42: #{tpu_custom_call.1} parent=31 // pred_check_branch
          %245 = sbr.rel (%p243) target = $region44
        $region43: #{tpu_custom_call.1} parent=31 // pred_region
          %246 = dma.done %s239, 384
        $region44: #{tpu_custom_call.1} parent=31 // pred_fallthru
          _
        %p247 = pneg %p56
        %p248 = pneg %p53
        %s249 = sand.u32 %s21, 1
        %s250 = scalar_lea.sflag [#allocation6], %s249
        %s251 = sand.u32 %s71, 1
        %s252 = smul.addr %s251, 16
        %s253 = scalar_lea.vmem [#allocation5], %s252
        %p254 = pneg %p84
        %p255 = pneg %p81
        %s256 = sand.u32 %s21, 1
        %s257 = scalar_lea.sflag [#allocation6], %s256
        %s258 = sand.u32 %s99, 1
        %s259 = smul.addr %s258, 24
        %s260 = scalar_lea.vmem [#allocation7], %s259
        %p261 = pneg %p112
        %p262 = pneg %p109
        %p263 = pneg %p142
        %p264 = pneg %p139
        %s265 = sand.u32 %s129, 1
        %s266 = scalar_lea.sflag [#allocation4], %s265
        %s267 = sand.u32 %s129, 1
        %s268 = smul.addr %s267, 16
        %s269 = scalar_lea.vmem [#allocation8], %s268
        %s270 = smul.u32 2, %s28
        %s271 = smul.u32 3, %s27
        %s272 = smul.u32 2, %s28
        %v273 = vld [vmem:[#allocation2] sm:$0x1]
        %v274 = vld [vmem:[%s233] sm:$0xff]
        %v275 = vld [vmem:[%s233 + $0x8] sm:$0xff]
        %v277 = vlaneseq
        %v278 = vshrl.u32 %v277, 7
        %v279 = vsub.s32 0, %v278
        %v280 = vrot.slane %v273, %v279
        %v282 = vmul.f32 %v274, %v280
        %v283 = vmul.f32 %v275, %v280
        %v284 = vld [vmem:[%s242] sm:$0xff]
        %v285 = vld [vmem:[%s242 + $0x8] sm:$0xff]
        %v286 = vld [vmem:[%s242 + $0x10] sm:$0xff]
        %vm287 = vcmask 261120
        %v289 = vsel %vm287, %v282, 0
        %v292 = vsel %vm287, %v283, 0
        %v295 = vsel %vm287, %v284, 0
        %v298 = vsel %vm287, %v285, 0
        %v301 = vsel %vm287, %v286, 0
        %303 = vmatprep.subr.mxu0 0.0
        %304 = vmatpush1.xpose.msra.mxu0 %v295
        %305 = vmatprep.subr.mxu0 0.0
        %306 = vmatpush1.xpose.msra.mxu0 %v298
        %307 = vmatprep.subr.mxu0 0.0
        %308 = vmatpush1.xpose.msra.mxu0 %v301
        %309 = vmatprep.subr.mxu0 0.0
        %310 = vmatpush1.xpose.msra.mxu0 0.0
        %311 = vmatprep.subr.mxu0 0.0
        %312 = vmatpush1.xpose.msra.mxu0 0.0
        %313 = vmatprep.subr.mxu0 0.0
        %314 = vmatpush1.xpose.msra.mxu0 0.0
        %315 = vmatprep.subr.mxu0 0.0
        %316 = vmatpush1.xpose.msra.mxu0 0.0
        %317 = vmatprep.subr.mxu0 0.0
        %318 = vmatpush1.xpose.msra.mxu0 0.0
        %319 = vmatprep.subr.mxu0 0.0
        %320 = vmatpush1.xpose.msra.mxu0 0.0
        %321 = vmatprep.subr.mxu0 0.0
        %322 = vmatpush1.xpose.msra.mxu0 0.0
        %323 = vmatprep.subr.mxu0 0.0
        %324 = vmatpush1.xpose.msra.mxu0 0.0
        %325 = vmatprep.subr.mxu0 0.0
        %326 = vmatpush1.xpose.msra.mxu0 0.0
        %327 = vmatprep.subr.mxu0 0.0
        %328 = vmatpush1.xpose.msra.mxu0 0.0
        %329 = vmatprep.subr.mxu0 0.0
        %330 = vmatpush1.xpose.msra.mxu0 0.0
        %331 = vmatprep.subr.mxu0 0.0
        %332 = vmatpush1.xpose.msra.mxu0 0.0
        %333 = vmatprep.subr.mxu0 0.0
        %334 = vmatpush1.xpose.msra.mxu0 0.0
        %335 = vmatprep.subr.mxu0 0.0
        %336 = vmatpush1.xpose.msra.mxu0 0.0
        %337 = vmatprep.subr.mxu0 0.0
        %338 = vmatpush1.xpose.msra.mxu0 0.0
        %339 = vmatprep.subr.mxu0 0.0
        %340 = vmatpush1.xpose.msra.mxu0 0.0
        %341 = vmatprep.subr.mxu0 0.0
        %342 = vmatpush1.xpose.msra.mxu0 0.0
        %343 = vmatprep.subr.mxu0 0.0
        %344 = vmatpush1.xpose.msra.mxu0 0.0
        %345 = vmatprep.subr.mxu0 0.0
        %346 = vmatpush1.xpose.msra.mxu0 0.0
        %347 = vmatprep.subr.mxu0 0.0
        %348 = vmatpush1.xpose.msra.mxu0 0.0
        %349 = vmatprep.subr.mxu0 0.0
        %350 = vmatpush1.xpose.msra.mxu0 0.0
        %351 = vmatprep.subr.mxu0 0.0
        %352 = vmatpush1.xpose.msra.mxu0 0.0
        %353 = vmatprep.subr.mxu0 0.0
        %354 = vmatpush1.xpose.msra.mxu0 0.0
        %355 = vmatprep.subr.mxu0 0.0
        %356 = vmatpush1.xpose.msra.mxu0 0.0
        %357 = vmatprep.subr.mxu0 0.0
        %358 = vmatpush1.xpose.msra.mxu0 0.0
        %359 = vmatprep.subr.mxu0 0.0
        %360 = vmatpush1.xpose.msra.mxu0 0.0
        %361 = vmatprep.subr.mxu0 0.0
        %362 = vmatpush1.xpose.msra.mxu0 0.0
        %363 = vmatprep.subr.mxu0 0.0
        %364 = vmatpush1.xpose.msra.mxu0 0.0
        %365 = vmatprep.subr.mxu0 0.0
        %366 = vmatpush1.xpose.msra.mxu0 0.0
        %367 = vmatprep.mubr.f32.mxu0 0.0
        %368 = vmatmul.mubr.f32.gmra.mrb[0].mxu0 %v289
        %v369 = vpop.f32.mrb[0].mxu0
        %v370 = vadd.f32 0.0, %v369
        %v371 = vpop.f32.mrb[0].mxu0
        %372 = vmatprep.mubr.f32.mxu0 0.0
        %373 = vmatmul.mubr.f32.gmra.mrb[0].mxu0 %v292
        %v374 = vpop.f32.mrb[0].mxu0
        %v375 = vadd.f32 0.0, %v374
        %v376 = vpop.f32.mrb[0].mxu0
        %377 = vdwg.mxu0
        %v378 = vmax.f32 %v370, -30.0
        %v379 = vmax.f32 %v375, -30.0
        %v380 = vmin.f32 %v378, 30.0
        %v381 = vmin.f32 %v379, 30.0
        %v382 = vsub.f32 0.0, %v380
        %v383 = vsub.f32 0.0, %v381
        %v384 = vmul.f32 %v382, 1.442695
        %v385 = vpow.pop %v384
        %v386 = vmul.f32 %v383, 1.442695
        %v387 = vpow.pop %v386
        %v388 = vadd.f32 %v385, 1.0
        %v389 = vadd.f32 %v387, 1.0
        %v390 = vrcp.pop %v388
        %v391 = vrcp.pop %v389
        %vm392 = vcmask 195584
        %393 = vst.msk [vmem:[%s269] sm:$0xff] %vm392, %v390
        %394 = vst.msk [vmem:[%s269 + $0x8] sm:$0xff] %vm392, %v391
        %s395 = sand.u32 %s129, 1
        %s396 = scalar_lea.sflag [#allocation4], %s395
        %s397 = sand.u32 %s129, 1
        %s398 = smul.addr %s397, 16
        %s399 = scalar_lea.vmem [#allocation8], %s398
        // Predicated region
        $region45: #{tpu_custom_call.1} parent=31 // pred_check
          %p400 = pneg %p139
        $region46: #{tpu_custom_call.1} parent=31 // pred_check_branch
          %402 = sbr.rel (%p400) target = $region48
        $region47: #{tpu_custom_call.1} parent=31 // pred_region
          %s403 = smul.u32 2, %s28
          %s405 = ssub.s32 256, 256
          %406 = vsyncadd %s396, %s405
          %s407 = sadd.s32 %s27, %s403
          %s408 = smul.addr %s26, 2
          %s409 = sadd.s32 %s407, %s408
          %s410 = smul.addr %s409, 128
          %s411 = scalar_lea.hbm %s3, %s410
          %s412 = sshll.u32 %s399, 4
          %s413 = int_to_ptr.vmem [resolvable:$true] %s412
          %418 = dma.vmem_to_hbm [thread:$0]  %s413, 256, %s411, %s396, 128, 128, 8
        $region48: #{tpu_custom_call.1} parent=31 // pred_fallthru
          _
      $region32: #{tpu_custom_call.1} parent=5 // pred_fallthru
        _
      %p419 = scmp.le.s32.totalorder 2, %s16
      // Predicated region
      $region49: #{tpu_custom_call.1} parent=5 // pred_check
        %p420 = pneg %p419
      $region50: #{tpu_custom_call.1} parent=5 // pred_check_branch
        %422 = sbr.rel (%p420) target = $region52
      $region51: #{tpu_custom_call.1} parent=5 // pred_region
        %s423 = ssub.s32 %s16, 2
        // Predicated region
        $region53: #{tpu_custom_call.1} parent=51 // pred_check
          %p424 = pneg %p145
        $region54: #{tpu_custom_call.1} parent=51 // pred_check_branch
          %426 = sbr.rel (%p424) target = $region56
        $region55: #{tpu_custom_call.1} parent=51 // pred_region
          %s427 = sand.u32 %s130, 1
          %s428 = scalar_lea.sflag [#allocation4], %s427
          %s429 = sand.u32 %s130, 1
          %s430 = smul.addr %s429, 16
          %s431 = scalar_lea.vmem [#allocation8], %s430
          %432 = dma.done %s428, 256
        $region56: #{tpu_custom_call.1} parent=51 // pred_fallthru
          _
      $region52: #{tpu_custom_call.1} parent=5 // pred_fallthru
        _
    $region6: #{tpu_custom_call.1} parent=1 // loop_footer
      %s20 = sadd.s32 1, %s16
    $region7: #{tpu_custom_call.1} parent=1 // loop_footer_branch
      %15 = sbr.rel target = $region3
    $region8: #{tpu_custom_call.1} parent=1 // loop_exit
      _
    %433 = vsyncpa [#allocation3], 1
    %s434 = scalar_lea.sflag [#allocation3], 1
    %435 = vsyncpa %s434, 1
    %436 = vsyncpa [#allocation6], 1
    %s437 = scalar_lea.sflag [#allocation6], 1
    %438 = vsyncpa %s437, 1
    %439 = vsyncpa [#allocation4], 1
    %s440 = scalar_lea.sflag [#allocation4], 1
    %441 = vsyncpa %s440, 1

</llo_original>
